<compile_context>
chip_gen: v7x
topology: tpu7x:2x2x1
jax: 0.10.0
libtpu: 0.0.40
codegen_flags: <defaults>
</compile_context>

<pallas_src>
import math

import jax
import jax.numpy as jnp
from jax.experimental import pallas as pl
from jax.experimental.pallas import tpu as pltpu

_A = math.sqrt(2.0 / math.pi)          # sqrt(2/pi)
_B = _A * 0.044715                     # folded constant: saves one vmul/elem

_LANES = 512                           # wide lane dim -> unmasked wide vst, fewer DMA descriptors
_MAX_ROWS_PER_TILE = 1024              # 1024 x 512 f32 = 2 MiB per buffer (saturates HBM on all gens)


def _fast_gelu_kernel(x_ref, o_ref):
    x = x_ref[...].astype(jnp.float32)
    inner = x * (_A + _B * x * x)      # == sqrt(2/pi) * (x + 0.044715*x^3)
    y = 0.5 * x * (1.0 + jnp.tanh(inner))
    o_ref[...] = y.astype(o_ref.dtype)


def _sublane_align(dtype) -> int:
    """Minimum row multiple for clean sublane packing at this element width."""
    itemsize = jnp.dtype(dtype).itemsize
    if itemsize >= 4:
        return 8
    if itemsize == 2:
        return 16
    return 32


def fast_gelu(x: jax.Array) -> jax.Array:
    """0.5*x*(1+tanh(sqrt(2/pi)*(x+0.044715*x^3))) elementwise (FastGELU)."""
    orig_shape = x.shape
    orig_dtype = x.dtype

    flat = x.reshape(-1)
    n = flat.shape[0]

    sublanes = _sublane_align(orig_dtype)

    # Pad only to a sublane-aligned row multiple of the lane-dense slab, NOT
    # to a full tile; the ragged last block is handled by the grid.
    # gelu(0) = 0, so the pad region is harmless and gets sliced off.
    row_elems = sublanes * _LANES
    n_pad = pl.cdiv(n, row_elems) * row_elems
    if n_pad != n:
        flat = jnp.pad(flat, (0, n_pad - n))

    rows = n_pad // _LANES
    x2d = flat.reshape(rows, _LANES)

    # Tile selection (static, at trace time): big tiles for throughput, but
    # shrink so the grid has >=2 steps when possible (v7x: 2 TCs per chip).
    rows_per_tile = _MAX_ROWS_PER_TILE
    if rows < 2 * rows_per_tile:
        rows_per_tile = max(
            sublanes,
            ((pl.cdiv(rows, 2) + sublanes - 1) // sublanes) * sublanes,
        )
        rows_per_tile = min(rows_per_tile, rows)

    grid = (pl.cdiv(rows, rows_per_tile),)

    out2d = pl.pallas_call(
        _fast_gelu_kernel,
        out_shape=jax.ShapeDtypeStruct((rows, _LANES), orig_dtype),
        grid_spec=pltpu.PrefetchScalarGridSpec(
            num_scalar_prefetch=0,
            grid=grid,
            in_specs=[pl.BlockSpec((rows_per_tile, _LANES), lambda i: (i, 0))],
            out_specs=pl.BlockSpec((rows_per_tile, _LANES), lambda i: (i, 0)),
        ),
        compiler_params=pltpu.CompilerParams(
            dimension_semantics=("parallel",),
            # double-buffered in + out at 2 MiB/buffer ~= 8 MiB; 32 MiB leaves
            # headroom and stays within every generation's physical VMEM
            # (v7x physical VMEM per TC is 64 MiB).
            vmem_limit_bytes=32 * 1024 * 1024,
        ),
    )(x2d)

    out = out2d.reshape(-1)
    if n_pad != n:
        out = out[:n]
    return out.reshape(orig_shape)


def fast_gelu_ref(x: jax.Array) -> jax.Array:
    xf = x.astype(jnp.float32)
    return (0.5 * xf * (1.0 + jnp.tanh(_A * (xf + 0.044715 * xf ** 3)))).astype(x.dtype)


if __name__ == "__main__":
    key = jax.random.PRNGKey(0)
    # Small NCHW input consistent with the module (elementwise op).
    x = jax.random.normal(key, (2, 4, 16, 16), dtype=jnp.float32)

    y = fast_gelu(x)
    jax.block_until_ready(y)

    y_ref = fast_gelu_ref(x)
    assert y.shape == x.shape and y.dtype == x.dtype
    assert jnp.allclose(y, y_ref, atol=1e-5, rtol=1e-5), "mismatch vs reference"

    # Also exercise a non-divisible size to cover the ragged-last-block path.
    x2 = jax.random.normal(jax.random.PRNGKey(1), (3, 5, 7, 11), dtype=jnp.float32)
    y2 = fast_gelu(x2)
    jax.block_until_ready(y2)
    assert jnp.allclose(y2, fast_gelu_ref(x2), atol=1e-5, rtol=1e-5), "ragged mismatch"

    # And a bf16 input to cover the sub-32-bit sublane-packing path.
    x3 = jax.random.normal(jax.random.PRNGKey(2), (2, 3, 8, 8), dtype=jnp.bfloat16)
    y3 = fast_gelu(x3)
    jax.block_until_ready(y3)
    assert y3.dtype == jnp.bfloat16
    assert jnp.allclose(y3.astype(jnp.float32),
                        fast_gelu_ref(x3).astype(jnp.float32),
                        atol=2e-2, rtol=2e-2), "bf16 mismatch"

    print("KERNEL_OK")
</pallas_src>

<mosaic_0001>
module attributes {stable_mosaic.version = 11 : i64} {
  func.func @_fast_gelu_kernel(%arg0: i32, %arg1: memref<8x512xf32, #tpu.memory_space<vmem>>, %arg2: memref<8x512xf32, #tpu.memory_space<vmem>>) attributes {dimension_semantics = [#tpu.dimension_semantics<parallel>], iteration_bounds = array<i64: 1>, scalar_prefetch = 0 : i64, scratch_operands = 0 : i64, tpu.core_type = #tpu.core_type<tc>, window_params = [{transform_indices = @transform_0, window_bounds = array<i64: 8, 512>}, {transform_indices = @transform_1, window_bounds = array<i64: 8, 512>}]} {
    %c0 = arith.constant 0 : index
    %c0_0 = arith.constant 0 : index
    %0 = vector.load %arg1[%c0, %c0_0] : memref<8x512xf32, #tpu.memory_space<vmem>>, vector<8x512xf32>
    %cst = arith.constant 0.0356774069 : f32
    %1 = vector.broadcast %cst : f32 to vector<8x512xf32>
    %2 = arith.mulf %1, %0 : vector<8x512xf32>
    %3 = arith.mulf %2, %0 : vector<8x512xf32>
    %cst_1 = arith.constant 0.797884583 : f32
    %4 = vector.broadcast %cst_1 : f32 to vector<8x512xf32>
    %5 = arith.addf %4, %3 : vector<8x512xf32>
    %6 = arith.mulf %0, %5 : vector<8x512xf32>
    %cst_2 = arith.constant 5.000000e-01 : f32
    %7 = vector.broadcast %cst_2 : f32 to vector<8x512xf32>
    %8 = arith.mulf %7, %0 : vector<8x512xf32>
    %9 = math.tanh %6 : vector<8x512xf32>
    %cst_3 = arith.constant 1.000000e+00 : f32
    %10 = vector.broadcast %cst_3 : f32 to vector<8x512xf32>
    %11 = arith.addf %10, %9 : vector<8x512xf32>
    %12 = arith.mulf %8, %11 : vector<8x512xf32>
    %c0_4 = arith.constant 0 : index
    %c0_5 = arith.constant 0 : index
    %13 = vector.load %arg2[%c0_4, %c0_5] : memref<8x512xf32, #tpu.memory_space<vmem>>, vector<8x512xf32>
    tpu.vector_store %arg2[%c0_4, %c0_5], %12 {strides = array<i32>} : memref<8x512xf32, #tpu.memory_space<vmem>>, vector<8x512xf32>,
    return
  }
  func.func @transform_0(%arg0: i32) -> (i32, i32) {
    %c0_i32 = arith.constant 0 : i32
    %c0_i32_0 = arith.constant 0 : i32
    return %arg0, %c0_i32 : i32, i32
  }
  func.func @transform_1(%arg0: i32) -> (i32, i32) {
    %c0_i32 = arith.constant 0 : i32
    %c0_i32_0 = arith.constant 0 : i32
    return %arg0, %c0_i32 : i32, i32
  }
}

</mosaic_0001>

<llo_original>
// kernel: tpu_custom_call.1
$region0: #{tpu_custom_call.1}
  #allocation0 [shape = 'u32[]', space=smem, size = 0x4, offset = 0x4, fixed_abs, tag = 'smem constant byte address 0x4 - core index']
  #allocation1 [shape = 'u32[144,128]{1,0:T(1,128)}', space=vmem, size = 0x12000, scoped, tag = 'internal scratch']
  %s0 = inlined_call_operand.hbm [shape: f32[8,512], index: 0, kind: input, shape index: {}]
  %s1 = inlined_call_operand.hbm [shape: f32[8,512], index: 1, kind: output, shape index: {}]
  %s2 = sld [smem:[#allocation0]]
  $region18: #{tpu_custom_call.1} parent=0
    _
  %s4 = ssub.s32 1, %s2
  %s5 = scalar_select 0, %s4, %s2
  $region1: #{tpu_custom_call.1} parent=0
    #allocation2 [shape = 'u8[16384]{0}', space=vmem, size = 0x4000, scoped, tag = 'input window, operand 0, single buffered']
    #allocation3 [shape = 's32[1]{0}', space=sflag, size = 0x4, scoped, tag = 'scoped memory for tpu_custom_call.1']
    #allocation4 [shape = 's32[1]{0}', space=sflag, size = 0x4, scoped, tag = 'scoped memory for tpu_custom_call.1']
    #allocation5 [shape = 'u8[16384]{0}', space=vmem, size = 0x4000, scoped, tag = 'output window, operand 0, single buffered']
    %6 = vsyncpa [#allocation3], 0
    %7 = vsyncpa [#allocation4], 0
    // Predicated region
    $region2: #{tpu_custom_call.1} parent=1 // pred_check
      _
    $region3: #{tpu_custom_call.1} parent=1 // pred_check_branch
      %9 = sbr.rel (0) target = $region5
    $region4: #{tpu_custom_call.1} parent=1 // pred_region
      %s11 = ssub.s32 512, 512
      %12 = vsyncadd [#allocation3], %s11
      %s14 = sshll.u32 [#allocation2], 4
      %s15 = int_to_ptr.vmem [resolvable:$true] %s14
      %17 = dma.hbm_to_vmem [thread:$0]  %s0, 512, %s15, [#allocation3]
    $region5: #{tpu_custom_call.1} parent=1 // pred_fallthru
      _
    // Predicated region
    $region6: #{tpu_custom_call.1} parent=1 // pred_check
      _
    $region7: #{tpu_custom_call.1} parent=1 // pred_check_branch
      %19 = sbr.rel (0) target = $region9
    $region8: #{tpu_custom_call.1} parent=1 // pred_region
      %20 = dma.done [#allocation3], 512
    $region9: #{tpu_custom_call.1} parent=1 // pred_fallthru
      _
    %v21 = vld [vmem:[#allocation2] sm:$0xff]
    %v22 = vld [vmem:[#allocation2 + $0x8] sm:$0xff]
    %v23 = vld [vmem:[#allocation2 + $0x10] sm:$0xff]
    %v24 = vld [vmem:[#allocation2 + $0x18] sm:$0xff]
    %v25 = vmul.f32 %v21, 0.035677407
    %v26 = vmul.f32 %v22, 0.035677407
    %v27 = vmul.f32 %v23, 0.035677407
    %v28 = vmul.f32 %v24, 0.035677407
    %v29 = vmul.f32 %v25, %v21
    %v30 = vmul.f32 %v26, %v22
    %v31 = vmul.f32 %v27, %v23
    %v32 = vmul.f32 %v28, %v24
    %v33 = vadd.f32 %v29, 0.7978846
    %v34 = vadd.f32 %v30, 0.7978846
    %v35 = vadd.f32 %v31, 0.7978846
    %v36 = vadd.f32 %v32, 0.7978846
    %v37 = vmul.f32 %v21, %v33
    %v38 = vmul.f32 %v22, %v34
    %v39 = vmul.f32 %v23, %v35
    %v40 = vmul.f32 %v24, %v36
    %v41 = vmul.f32 %v21, 0.5
    %v42 = vmul.f32 %v22, 0.5
    %v43 = vmul.f32 %v23, 0.5
    %v44 = vmul.f32 %v24, 0.5
    %v45 = vtanh.pop %v37
    %v46 = vtanh.pop %v38
    %v47 = vtanh.pop %v39
    %v48 = vtanh.pop %v40
    %v49 = vadd.f32 %v45, 1.0
    %v50 = vadd.f32 %v46, 1.0
    %v51 = vadd.f32 %v47, 1.0
    %v52 = vadd.f32 %v48, 1.0
    %v53 = vmul.f32 %v41, %v49
    %v54 = vmul.f32 %v42, %v50
    %v55 = vmul.f32 %v43, %v51
    %v56 = vmul.f32 %v44, %v52
    %57 = vst [vmem:[#allocation5] sm:$0xff] %v53
    %58 = vst [vmem:[#allocation5 + $0x8] sm:$0xff] %v54
    %59 = vst [vmem:[#allocation5 + $0x10] sm:$0xff] %v55
    %60 = vst [vmem:[#allocation5 + $0x18] sm:$0xff] %v56
    // Predicated region
    $region10: #{tpu_custom_call.1} parent=1 // pred_check
      _
    $region11: #{tpu_custom_call.1} parent=1 // pred_check_branch
      %62 = sbr.rel (0) target = $region13
    $region12: #{tpu_custom_call.1} parent=1 // pred_region
      %s64 = ssub.s32 512, 512
      %65 = vsyncadd [#allocation4], %s64
      %s67 = sshll.u32 [#allocation5], 4
      %s68 = int_to_ptr.vmem [resolvable:$true] %s67
      %70 = dma.vmem_to_hbm [thread:$0]  %s68, 512, %s1, [#allocation4]
    $region13: #{tpu_custom_call.1} parent=1 // pred_fallthru
      _
    // Predicated region
    $region14: #{tpu_custom_call.1} parent=1 // pred_check
      _
    $region15: #{tpu_custom_call.1} parent=1 // pred_check_branch
      %72 = sbr.rel (0) target = $region17
    $region16: #{tpu_custom_call.1} parent=1 // pred_region
      %73 = dma.done [#allocation4], 512
    $region17: #{tpu_custom_call.1} parent=1 // pred_fallthru
      _
    %74 = vsyncpa [#allocation3], 1
    %75 = vsyncpa [#allocation4], 1

</llo_original>
